<compile_context>
chip_gen: v6e
topology: v6e:2x2x1
jax: 0.10.0
libtpu: 0.0.40
codegen_flags: <defaults>
</compile_context>

<pallas_src>
import numpy as np
import jax
import jax.numpy as jnp
from jax.experimental import pallas as pl
from jax.experimental.pallas import tpu as pltpu


def _make_kernel(H, W, Cin, C1, Cout):
    HW = H * W
    # 3x3 taps in (ky, kx) order == OIHW weight order; offsets (sy, sx) = (ky-1, kx-1).
    taps = [(ky - 1, kx - 1) for ky in range(3) for kx in range(3)]
    # roll(v, s, axis=1)[p] = v[(p - s) mod HW]; we want v[p + sy*W + sx] -> s = -(sy*W+sx).
    shifts = [(-(sy * W + sx)) % HW for (sy, sx) in taps]

    def kernel(x_ref, masks_ref, w1_ref, w2_ref, b1_ref, b2_ref, out_ref):
        # x_ref:     (1, Cin, HW)        VMEM  one batch element, flattened spatial
        # masks_ref: (9, HW)             VMEM  0/1 validity mask per 3x3 tap (resident)
        # w1_ref:    (Cin, >=C1*9)       VMEM  conv1 weights, lane-major (ci, co*9+t)
        # w2_ref:    (C1,  >=Cout*9)     VMEM  conv2 weights, lane-major (c,  co*9+t)
        # b1_ref:    (C1,)               SMEM
        # b2_ref:    (Cout,)             SMEM
        # out_ref:   (1, Cout, HW)       VMEM
        x = x_ref[0]                                   # (Cin, HW)
        m = masks_ref[...]                             # (9, HW)
        w1 = w1_ref[...]                               # (Cin, lanes1)
        w2 = w2_ref[...]                               # (C1,  lanes2)
        mrows = [m[t:t + 1, :] for t in range(9)]      # hoisted (1, HW) mask rows

        def windows(v):
            # v: (C, HW) -> 9 zero-padded shifted windows, each (C, HW).
            outs = []
            for t, (sy, sx) in enumerate(taps):
                if sy == 0 and sx == 0:
                    outs.append(v)
                else:
                    # roll on lanes (XLU) + mask wrapped / out-of-bounds positions (VPU).
                    outs.append(pltpu.roll(v, shifts[t], axis=1) * mrows[t])
            return outs

        def conv(win, w_mat, b_ref, c_out, leaky):
            # win: list of 9 (C_in, HW); w_mat: (C_in, lanes); returns (c_out, HW).
            rows = []
            for co in range(c_out):
                acc = w_mat[:, co * 9:co * 9 + 1] * win[0]          # (C_in, HW)
                for t in range(1, 9):
                    acc = acc + w_mat[:, co * 9 + t:co * 9 + t + 1] * win[t]
                r = jnp.sum(acc, axis=0, keepdims=True) + b_ref[co]  # (1, HW)
                if leaky:
                    r = jnp.where(r > 0, r, 0.01 * r)
                rows.append(r)
            return jnp.concatenate(rows, axis=0)                     # (c_out, HW)

        # conv1 + bias + LeakyReLU(0.01); intermediate stays in registers.
        h = conv(windows(x), w1, b1_ref, C1, leaky=True)             # (C1, HW)
        # conv2 + bias; single lane-dense store of all output channels.
        out_ref[0] = conv(windows(h), w2, b2_ref, Cout, leaky=False)

    return kernel


def _pack_weights(w, c_out, c_in):
    # OIHW (c_out, c_in, 3, 3) -> lane-major (c_in, c_out*9), lane-padded to 128.
    wl = jnp.transpose(w.reshape(c_out, c_in, 9), (1, 0, 2)).reshape(c_in, c_out * 9)
    lanes = max(128, ((c_out * 9 + 127) // 128) * 128)
    return jnp.pad(wl, ((0, 0), (0, lanes - c_out * 9))).astype(jnp.float32)


def feature_model_forward(x, w1, b1, w2, b2):
    """x: (N, Cin, H, W) f32.  Conv weights in PyTorch OIHW layout."""
    N, Cin, H, W = x.shape
    C1 = w1.shape[0]
    Cout = w2.shape[0]
    HW = H * W

    # Contiguous reshape only (no jnp.pad of activations, no extra HBM bytes).
    x_flat = x.reshape(N, Cin, HW).astype(jnp.float32)
    w1v = _pack_weights(w1, C1, Cin)          # (Cin, 128)
    w2v = _pack_weights(w2, Cout, C1)         # (C1, 128)
    b1f = b1.astype(jnp.float32)
    b2f = b2.astype(jnp.float32)

    # Constant 0/1 validity masks for the 9 conv taps (host-side, tiny, resident).
    yy, xx = np.meshgrid(np.arange(H), np.arange(W), indexing="ij")
    masks = np.stack([
        ((yy + sy >= 0) & (yy + sy < H) & (xx + sx >= 0) & (xx + sx < W))
        .reshape(-1).astype(np.float32)
        for sy in (-1, 0, 1) for sx in (-1, 0, 1)
    ])
    masks = jnp.asarray(masks)                # (9, HW)

    kernel = _make_kernel(H, W, Cin, C1, Cout)

    out_flat = pl.pallas_call(
        kernel,
        out_shape=jax.ShapeDtypeStruct((N, Cout, HW), jnp.float32),
        grid_spec=pltpu.PrefetchScalarGridSpec(
            num_scalar_prefetch=0,
            grid=(N,),
            in_specs=[
                pl.BlockSpec((1, Cin, HW), lambda n: (n, 0, 0)),
                pl.BlockSpec((9, HW), lambda n: (0, 0)),              # resident
                pl.BlockSpec((Cin, w1v.shape[1]), lambda n: (0, 0)),  # resident
                pl.BlockSpec((C1, w2v.shape[1]), lambda n: (0, 0)),   # resident
                pl.BlockSpec(memory_space=pltpu.MemorySpace.SMEM),
                pl.BlockSpec(memory_space=pltpu.MemorySpace.SMEM),
            ],
            out_specs=pl.BlockSpec((1, Cout, HW), lambda n: (n, 0, 0)),
        ),
        compiler_params=pltpu.CompilerParams(
            dimension_semantics=("parallel",)),                        # 2 TCs on v7x
    )(x_flat, masks, w1v, w2v, b1f, b2f)

    return out_flat.reshape(N, Cout, H, W)


def _reference(x, w1, b1, w2, b2):
    dn = ("NCHW", "OIHW", "NCHW")
    y = jax.lax.conv_general_dilated(x, w1, (1, 1), [(1, 1), (1, 1)],
                                     dimension_numbers=dn)
    y = y + b1[None, :, None, None]
    y = jnp.where(y > 0, y, 0.01 * y)
    y = jax.lax.conv_general_dilated(y, w2, (1, 1), [(1, 1), (1, 1)],
                                     dimension_numbers=dn)
    return y + b2[None, :, None, None]


def _init_conv(key, out_ch, in_ch):
    # PyTorch Conv2d default init: U(-1/sqrt(fan_in), 1/sqrt(fan_in))
    kw, kb = jax.random.split(key)
    fan_in = in_ch * 3 * 3
    bound = 1.0 / jnp.sqrt(fan_in)
    w = jax.random.uniform(kw, (out_ch, in_ch, 3, 3), jnp.float32,
                           -bound, bound)
    b = jax.random.uniform(kb, (out_ch,), jnp.float32, -bound, bound)
    return w, b


if __name__ == "__main__":
    # Feature_Model(channels=2, out_channels=3, in_channels=3, layers=2)
    channels, out_channels, in_channels = 2, 3, 3
    N, H, W = 2, 16, 16

    key = jax.random.PRNGKey(0)
    kx, k1, k2 = jax.random.split(key, 3)
    x = jax.random.normal(kx, (N, in_channels, H, W), jnp.float32)
    w1, b1 = _init_conv(k1, channels, in_channels)      # FeatureBlock '1'
    w2, b2 = _init_conv(k2, out_channels, channels)     # FeatureBlock '-1'

    out = jax.block_until_ready(feature_model_forward(x, w1, b1, w2, b2))
    ref = jax.block_until_ready(_reference(x, w1, b1, w2, b2))

    assert out.shape == (N, out_channels, H, W)
    assert jnp.allclose(out, ref, atol=1e-4, rtol=1e-4), "mismatch vs reference"

    print("KERNEL_OK")
</pallas_src>

<mosaic_0001>
module attributes {stable_mosaic.version = 11 : i64} {
  func.func @kernel(%arg0: i32, %arg1: memref<1x3x256xf32, #tpu.memory_space<vmem>>, %arg2: memref<9x256xf32, #tpu.memory_space<vmem>>, %arg3: memref<3x128xf32, #tpu.memory_space<vmem>>, %arg4: memref<2x128xf32, #tpu.memory_space<vmem>>, %arg5: memref<2xf32, #tpu.memory_space<smem>>, %arg6: memref<3xf32, #tpu.memory_space<smem>>, %arg7: memref<1x3x256xf32, #tpu.memory_space<vmem>>) attributes {dimension_semantics = [#tpu.dimension_semantics<parallel>], iteration_bounds = array<i64: 2>, scalar_prefetch = 0 : i64, scratch_operands = 0 : i64, tpu.core_type = #tpu.core_type<tc>, window_params = [{transform_indices = @transform_0, window_bounds = array<i64: 1, 3, 256>}, {pipeline_mode = #tpu.pipeline_mode<synchronous>, transform_indices = @transform_1, window_bounds = array<i64: 9, 256>}, {pipeline_mode = #tpu.pipeline_mode<synchronous>, transform_indices = @transform_2, window_bounds = array<i64: 3, 128>}, {pipeline_mode = #tpu.pipeline_mode<synchronous>, transform_indices = @transform_3, window_bounds = array<i64: 2, 128>}, {transform_indices = @transform_4, window_bounds = array<i64: 2>}, {transform_indices = @transform_5, window_bounds = array<i64: 3>}, {transform_indices = @transform_6, window_bounds = array<i64: 1, 3, 256>}]} {
    %c0 = arith.constant 0 : index
    %c0_0 = arith.constant 0 : index
    %c0_1 = arith.constant 0 : index
    %0 = vector.load %arg1[%c0, %c0_0, %c0_1] : memref<1x3x256xf32, #tpu.memory_space<vmem>>, vector<1x3x256xf32>
    %1 = vector.shape_cast %0 : vector<1x3x256xf32> to vector<3x256xf32>
    %c0_2 = arith.constant 0 : index
    %c0_3 = arith.constant 0 : index
    %2 = vector.load %arg2[%c0_2, %c0_3] : memref<9x256xf32, #tpu.memory_space<vmem>>, vector<9x256xf32>
    %c0_4 = arith.constant 0 : index
    %c0_5 = arith.constant 0 : index
    %3 = vector.load %arg3[%c0_4, %c0_5] : memref<3x128xf32, #tpu.memory_space<vmem>>, vector<3x128xf32>
    %c0_6 = arith.constant 0 : index
    %c0_7 = arith.constant 0 : index
    %4 = vector.load %arg4[%c0_6, %c0_7] : memref<2x128xf32, #tpu.memory_space<vmem>>, vector<2x128xf32>
    %5 = vector.extract_strided_slice %2 {offsets = [0, 0], sizes = [1, 256], strides = [1, 1]} : vector<9x256xf32> to vector<1x256xf32>
    %6 = vector.extract_strided_slice %2 {offsets = [1, 0], sizes = [1, 256], strides = [1, 1]} : vector<9x256xf32> to vector<1x256xf32>
    %7 = vector.extract_strided_slice %2 {offsets = [2, 0], sizes = [1, 256], strides = [1, 1]} : vector<9x256xf32> to vector<1x256xf32>
    %8 = vector.extract_strided_slice %2 {offsets = [3, 0], sizes = [1, 256], strides = [1, 1]} : vector<9x256xf32> to vector<1x256xf32>
    %9 = vector.extract_strided_slice %2 {offsets = [5, 0], sizes = [1, 256], strides = [1, 1]} : vector<9x256xf32> to vector<1x256xf32>
    %10 = vector.extract_strided_slice %2 {offsets = [6, 0], sizes = [1, 256], strides = [1, 1]} : vector<9x256xf32> to vector<1x256xf32>
    %11 = vector.extract_strided_slice %2 {offsets = [7, 0], sizes = [1, 256], strides = [1, 1]} : vector<9x256xf32> to vector<1x256xf32>
    %12 = vector.extract_strided_slice %2 {offsets = [8, 0], sizes = [1, 256], strides = [1, 1]} : vector<9x256xf32> to vector<1x256xf32>
    %c17_i32 = arith.constant 17 : i32
    %13 = tpu.dynamic_rotate %1 by %c17_i32 dim 1 : vector<3x256xf32>, i32 -> vector<3x256xf32>
    %14 = vector.broadcast %5 : vector<1x256xf32> to vector<3x256xf32>
    %15 = arith.mulf %13, %14 : vector<3x256xf32>
    %c16_i32 = arith.constant 16 : i32
    %16 = tpu.dynamic_rotate %1 by %c16_i32 dim 1 : vector<3x256xf32>, i32 -> vector<3x256xf32>
    %17 = vector.broadcast %6 : vector<1x256xf32> to vector<3x256xf32>
    %18 = arith.mulf %16, %17 : vector<3x256xf32>
    %c15_i32 = arith.constant 15 : i32
    %19 = tpu.dynamic_rotate %1 by %c15_i32 dim 1 : vector<3x256xf32>, i32 -> vector<3x256xf32>
    %20 = vector.broadcast %7 : vector<1x256xf32> to vector<3x256xf32>
    %21 = arith.mulf %19, %20 : vector<3x256xf32>
    %c1_i32 = arith.constant 1 : i32
    %22 = tpu.dynamic_rotate %1 by %c1_i32 dim 1 : vector<3x256xf32>, i32 -> vector<3x256xf32>
    %23 = vector.broadcast %8 : vector<1x256xf32> to vector<3x256xf32>
    %24 = arith.mulf %22, %23 : vector<3x256xf32>
    %c255_i32 = arith.constant 255 : i32
    %25 = tpu.dynamic_rotate %1 by %c255_i32 dim 1 : vector<3x256xf32>, i32 -> vector<3x256xf32>
    %26 = vector.broadcast %9 : vector<1x256xf32> to vector<3x256xf32>
    %27 = arith.mulf %25, %26 : vector<3x256xf32>
    %c241_i32 = arith.constant 241 : i32
    %28 = tpu.dynamic_rotate %1 by %c241_i32 dim 1 : vector<3x256xf32>, i32 -> vector<3x256xf32>
    %29 = vector.broadcast %10 : vector<1x256xf32> to vector<3x256xf32>
    %30 = arith.mulf %28, %29 : vector<3x256xf32>
    %c240_i32 = arith.constant 240 : i32
    %31 = tpu.dynamic_rotate %1 by %c240_i32 dim 1 : vector<3x256xf32>, i32 -> vector<3x256xf32>
    %32 = vector.broadcast %11 : vector<1x256xf32> to vector<3x256xf32>
    %33 = arith.mulf %31, %32 : vector<3x256xf32>
    %c239_i32 = arith.constant 239 : i32
    %34 = tpu.dynamic_rotate %1 by %c239_i32 dim 1 : vector<3x256xf32>, i32 -> vector<3x256xf32>
    %35 = vector.broadcast %12 : vector<1x256xf32> to vector<3x256xf32>
    %36 = arith.mulf %34, %35 : vector<3x256xf32>
    %37 = vector.extract_strided_slice %3 {offsets = [0, 0], sizes = [3, 1], strides = [1, 1]} : vector<3x128xf32> to vector<3x1xf32>
    %38 = vector.broadcast %37 : vector<3x1xf32> to vector<3x256xf32>
    %39 = arith.mulf %38, %15 : vector<3x256xf32>
    %40 = vector.extract_strided_slice %3 {offsets = [0, 1], sizes = [3, 1], strides = [1, 1]} : vector<3x128xf32> to vector<3x1xf32>
    %41 = vector.broadcast %40 : vector<3x1xf32> to vector<3x256xf32>
    %42 = arith.mulf %41, %18 : vector<3x256xf32>
    %43 = arith.addf %39, %42 : vector<3x256xf32>
    %44 = vector.extract_strided_slice %3 {offsets = [0, 2], sizes = [3, 1], strides = [1, 1]} : vector<3x128xf32> to vector<3x1xf32>
    %45 = vector.broadcast %44 : vector<3x1xf32> to vector<3x256xf32>
    %46 = arith.mulf %45, %21 : vector<3x256xf32>
    %47 = arith.addf %43, %46 : vector<3x256xf32>
    %48 = vector.extract_strided_slice %3 {offsets = [0, 3], sizes = [3, 1], strides = [1, 1]} : vector<3x128xf32> to vector<3x1xf32>
    %49 = vector.broadcast %48 : vector<3x1xf32> to vector<3x256xf32>
    %50 = arith.mulf %49, %24 : vector<3x256xf32>
    %51 = arith.addf %47, %50 : vector<3x256xf32>
    %52 = vector.extract_strided_slice %3 {offsets = [0, 4], sizes = [3, 1], strides = [1, 1]} : vector<3x128xf32> to vector<3x1xf32>
    %53 = vector.broadcast %52 : vector<3x1xf32> to vector<3x256xf32>
    %54 = arith.mulf %53, %1 : vector<3x256xf32>
    %55 = arith.addf %51, %54 : vector<3x256xf32>
    %56 = vector.extract_strided_slice %3 {offsets = [0, 5], sizes = [3, 1], strides = [1, 1]} : vector<3x128xf32> to vector<3x1xf32>
    %57 = vector.broadcast %56 : vector<3x1xf32> to vector<3x256xf32>
    %58 = arith.mulf %57, %27 : vector<3x256xf32>
    %59 = arith.addf %55, %58 : vector<3x256xf32>
    %60 = vector.extract_strided_slice %3 {offsets = [0, 6], sizes = [3, 1], strides = [1, 1]} : vector<3x128xf32> to vector<3x1xf32>
    %61 = vector.broadcast %60 : vector<3x1xf32> to vector<3x256xf32>
    %62 = arith.mulf %61, %30 : vector<3x256xf32>
    %63 = arith.addf %59, %62 : vector<3x256xf32>
    %64 = vector.extract_strided_slice %3 {offsets = [0, 7], sizes = [3, 1], strides = [1, 1]} : vector<3x128xf32> to vector<3x1xf32>
    %65 = vector.broadcast %64 : vector<3x1xf32> to vector<3x256xf32>
    %66 = arith.mulf %65, %33 : vector<3x256xf32>
    %67 = arith.addf %63, %66 : vector<3x256xf32>
    %68 = vector.extract_strided_slice %3 {offsets = [0, 8], sizes = [3, 1], strides = [1, 1]} : vector<3x128xf32> to vector<3x1xf32>
    %69 = vector.broadcast %68 : vector<3x1xf32> to vector<3x256xf32>
    %70 = arith.mulf %69, %36 : vector<3x256xf32>
    %71 = arith.addf %67, %70 : vector<3x256xf32>
    %cst = arith.constant dense<0.000000e+00> : vector<256xf32>
    %72 = vector.multi_reduction <add>, %71, %cst [0] : vector<3x256xf32> to vector<256xf32>
    %73 = vector.shape_cast %72 : vector<256xf32> to vector<1x256xf32>
    %c0_8 = arith.constant 0 : index
    %74 = memref.load %arg5[%c0_8] : memref<2xf32, #tpu.memory_space<smem>>
    %75 = vector.broadcast %74 : f32 to vector<1x256xf32>
    %76 = arith.addf %73, %75 : vector<1x256xf32>
    %cst_9 = arith.constant 0.000000e+00 : f32
    %77 = vector.broadcast %cst_9 : f32 to vector<1x256xf32>
    %78 = arith.cmpf ogt, %76, %77 : vector<1x256xf32>
    %cst_10 = arith.constant 0.00999999977 : f32
    %79 = vector.broadcast %cst_10 : f32 to vector<1x256xf32>
    %80 = arith.mulf %79, %76 : vector<1x256xf32>
    %81 = arith.select %78, %76, %80 : vector<1x256xi1>, vector<1x256xf32>
    %82 = vector.extract_strided_slice %3 {offsets = [0, 9], sizes = [3, 1], strides = [1, 1]} : vector<3x128xf32> to vector<3x1xf32>
    %83 = vector.broadcast %82 : vector<3x1xf32> to vector<3x256xf32>
    %84 = arith.mulf %83, %15 : vector<3x256xf32>
    %85 = vector.extract_strided_slice %3 {offsets = [0, 10], sizes = [3, 1], strides = [1, 1]} : vector<3x128xf32> to vector<3x1xf32>
    %86 = vector.broadcast %85 : vector<3x1xf32> to vector<3x256xf32>
    %87 = arith.mulf %86, %18 : vector<3x256xf32>
    %88 = arith.addf %84, %87 : vector<3x256xf32>
    %89 = vector.extract_strided_slice %3 {offsets = [0, 11], sizes = [3, 1], strides = [1, 1]} : vector<3x128xf32> to vector<3x1xf32>
    %90 = vector.broadcast %89 : vector<3x1xf32> to vector<3x256xf32>
    %91 = arith.mulf %90, %21 : vector<3x256xf32>
    %92 = arith.addf %88, %91 : vector<3x256xf32>
    %93 = vector.extract_strided_slice %3 {offsets = [0, 12], sizes = [3, 1], strides = [1, 1]} : vector<3x128xf32> to vector<3x1xf32>
    %94 = vector.broadcast %93 : vector<3x1xf32> to vector<3x256xf32>
    %95 = arith.mulf %94, %24 : vector<3x256xf32>
    %96 = arith.addf %92, %95 : vector<3x256xf32>
    %97 = vector.extract_strided_slice %3 {offsets = [0, 13], sizes = [3, 1], strides = [1, 1]} : vector<3x128xf32> to vector<3x1xf32>
    %98 = vector.broadcast %97 : vector<3x1xf32> to vector<3x256xf32>
    %99 = arith.mulf %98, %1 : vector<3x256xf32>
    %100 = arith.addf %96, %99 : vector<3x256xf32>
    %101 = vector.extract_strided_slice %3 {offsets = [0, 14], sizes = [3, 1], strides = [1, 1]} : vector<3x128xf32> to vector<3x1xf32>
    %102 = vector.broadcast %101 : vector<3x1xf32> to vector<3x256xf32>
    %103 = arith.mulf %102, %27 : vector<3x256xf32>
    %104 = arith.addf %100, %103 : vector<3x256xf32>
    %105 = vector.extract_strided_slice %3 {offsets = [0, 15], sizes = [3, 1], strides = [1, 1]} : vector<3x128xf32> to vector<3x1xf32>
    %106 = vector.broadcast %105 : vector<3x1xf32> to vector<3x256xf32>
    %107 = arith.mulf %106, %30 : vector<3x256xf32>
    %108 = arith.addf %104, %107 : vector<3x256xf32>
    %109 = vector.extract_strided_slice %3 {offsets = [0, 16], sizes = [3, 1], strides = [1, 1]} : vector<3x128xf32> to vector<3x1xf32>
    %110 = vector.broadcast %109 : vector<3x1xf32> to vector<3x256xf32>
    %111 = arith.mulf %110, %33 : vector<3x256xf32>
    %112 = arith.addf %108, %111 : vector<3x256xf32>
    %113 = vector.extract_strided_slice %3 {offsets = [0, 17], sizes = [3, 1], strides = [1, 1]} : vector<3x128xf32> to vector<3x1xf32>
    %114 = vector.broadcast %113 : vector<3x1xf32> to vector<3x256xf32>
    %115 = arith.mulf %114, %36 : vector<3x256xf32>
    %116 = arith.addf %112, %115 : vector<3x256xf32>
    %cst_11 = arith.constant dense<0.000000e+00> : vector<256xf32>
    %117 = vector.multi_reduction <add>, %116, %cst_11 [0] : vector<3x256xf32> to vector<256xf32>
    %118 = vector.shape_cast %117 : vector<256xf32> to vector<1x256xf32>
    %c1 = arith.constant 1 : index
    %119 = memref.load %arg5[%c1] : memref<2xf32, #tpu.memory_space<smem>>
    %120 = vector.broadcast %119 : f32 to vector<1x256xf32>
    %121 = arith.addf %118, %120 : vector<1x256xf32>
    %cst_12 = arith.constant 0.000000e+00 : f32
    %122 = vector.broadcast %cst_12 : f32 to vector<1x256xf32>
    %123 = arith.cmpf ogt, %121, %122 : vector<1x256xf32>
    %cst_13 = arith.constant 0.00999999977 : f32
    %124 = vector.broadcast %cst_13 : f32 to vector<1x256xf32>
    %125 = arith.mulf %124, %121 : vector<1x256xf32>
    %126 = arith.select %123, %121, %125 : vector<1x256xi1>, vector<1x256xf32>
    %127 = tpu.concatenate %81, %126 in 0 : vector<1x256xf32>, vector<1x256xf32> -> vector<2x256xf32>
    %c17_i32_14 = arith.constant 17 : i32
    %128 = tpu.dynamic_rotate %127 by %c17_i32_14 dim 1 : vector<2x256xf32>, i32 -> vector<2x256xf32>
    %129 = vector.broadcast %5 : vector<1x256xf32> to vector<2x256xf32>
    %130 = arith.mulf %128, %129 : vector<2x256xf32>
    %c16_i32_15 = arith.constant 16 : i32
    %131 = tpu.dynamic_rotate %127 by %c16_i32_15 dim 1 : vector<2x256xf32>, i32 -> vector<2x256xf32>
    %132 = vector.broadcast %6 : vector<1x256xf32> to vector<2x256xf32>
    %133 = arith.mulf %131, %132 : vector<2x256xf32>
    %c15_i32_16 = arith.constant 15 : i32
    %134 = tpu.dynamic_rotate %127 by %c15_i32_16 dim 1 : vector<2x256xf32>, i32 -> vector<2x256xf32>
    %135 = vector.broadcast %7 : vector<1x256xf32> to vector<2x256xf32>
    %136 = arith.mulf %134, %135 : vector<2x256xf32>
    %c1_i32_17 = arith.constant 1 : i32
    %137 = tpu.dynamic_rotate %127 by %c1_i32_17 dim 1 : vector<2x256xf32>, i32 -> vector<2x256xf32>
    %138 = vector.broadcast %8 : vector<1x256xf32> to vector<2x256xf32>
    %139 = arith.mulf %137, %138 : vector<2x256xf32>
    %c255_i32_18 = arith.constant 255 : i32
    %140 = tpu.dynamic_rotate %127 by %c255_i32_18 dim 1 : vector<2x256xf32>, i32 -> vector<2x256xf32>
    %141 = vector.broadcast %9 : vector<1x256xf32> to vector<2x256xf32>
    %142 = arith.mulf %140, %141 : vector<2x256xf32>
    %c241_i32_19 = arith.constant 241 : i32
    %143 = tpu.dynamic_rotate %127 by %c241_i32_19 dim 1 : vector<2x256xf32>, i32 -> vector<2x256xf32>
    %144 = vector.broadcast %10 : vector<1x256xf32> to vector<2x256xf32>
    %145 = arith.mulf %143, %144 : vector<2x256xf32>
    %c240_i32_20 = arith.constant 240 : i32
    %146 = tpu.dynamic_rotate %127 by %c240_i32_20 dim 1 : vector<2x256xf32>, i32 -> vector<2x256xf32>
    %147 = vector.broadcast %11 : vector<1x256xf32> to vector<2x256xf32>
    %148 = arith.mulf %146, %147 : vector<2x256xf32>
    %c239_i32_21 = arith.constant 239 : i32
    %149 = tpu.dynamic_rotate %127 by %c239_i32_21 dim 1 : vector<2x256xf32>, i32 -> vector<2x256xf32>
    %150 = vector.broadcast %12 : vector<1x256xf32> to vector<2x256xf32>
    %151 = arith.mulf %149, %150 : vector<2x256xf32>
    %152 = vector.extract_strided_slice %4 {offsets = [0, 0], sizes = [2, 1], strides = [1, 1]} : vector<2x128xf32> to vector<2x1xf32>
    %153 = vector.broadcast %152 : vector<2x1xf32> to vector<2x256xf32>
    %154 = arith.mulf %153, %130 : vector<2x256xf32>
    %155 = vector.extract_strided_slice %4 {offsets = [0, 1], sizes = [2, 1], strides = [1, 1]} : vector<2x128xf32> to vector<2x1xf32>
    %156 = vector.broadcast %155 : vector<2x1xf32> to vector<2x256xf32>
    %157 = arith.mulf %156, %133 : vector<2x256xf32>
    %158 = arith.addf %154, %157 : vector<2x256xf32>
    %159 = vector.extract_strided_slice %4 {offsets = [0, 2], sizes = [2, 1], strides = [1, 1]} : vector<2x128xf32> to vector<2x1xf32>
    %160 = vector.broadcast %159 : vector<2x1xf32> to vector<2x256xf32>
    %161 = arith.mulf %160, %136 : vector<2x256xf32>
    %162 = arith.addf %158, %161 : vector<2x256xf32>
    %163 = vector.extract_strided_slice %4 {offsets = [0, 3], sizes = [2, 1], strides = [1, 1]} : vector<2x128xf32> to vector<2x1xf32>
    %164 = vector.broadcast %163 : vector<2x1xf32> to vector<2x256xf32>
    %165 = arith.mulf %164, %139 : vector<2x256xf32>
    %166 = arith.addf %162, %165 : vector<2x256xf32>
    %167 = vector.extract_strided_slice %4 {offsets = [0, 4], sizes = [2, 1], strides = [1, 1]} : vector<2x128xf32> to vector<2x1xf32>
    %168 = vector.broadcast %167 : vector<2x1xf32> to vector<2x256xf32>
    %169 = arith.mulf %168, %127 : vector<2x256xf32>
    %170 = arith.addf %166, %169 : vector<2x256xf32>
    %171 = vector.extract_strided_slice %4 {offsets = [0, 5], sizes = [2, 1], strides = [1, 1]} : vector<2x128xf32> to vector<2x1xf32>
    %172 = vector.broadcast %171 : vector<2x1xf32> to vector<2x256xf32>
    %173 = arith.mulf %172, %142 : vector<2x256xf32>
    %174 = arith.addf %170, %173 : vector<2x256xf32>
    %175 = vector.extract_strided_slice %4 {offsets = [0, 6], sizes = [2, 1], strides = [1, 1]} : vector<2x128xf32> to vector<2x1xf32>
    %176 = vector.broadcast %175 : vector<2x1xf32> to vector<2x256xf32>
    %177 = arith.mulf %176, %145 : vector<2x256xf32>
    %178 = arith.addf %174, %177 : vector<2x256xf32>
    %179 = vector.extract_strided_slice %4 {offsets = [0, 7], sizes = [2, 1], strides = [1, 1]} : vector<2x128xf32> to vector<2x1xf32>
    %180 = vector.broadcast %179 : vector<2x1xf32> to vector<2x256xf32>
    %181 = arith.mulf %180, %148 : vector<2x256xf32>
    %182 = arith.addf %178, %181 : vector<2x256xf32>
    %183 = vector.extract_strided_slice %4 {offsets = [0, 8], sizes = [2, 1], strides = [1, 1]} : vector<2x128xf32> to vector<2x1xf32>
    %184 = vector.broadcast %183 : vector<2x1xf32> to vector<2x256xf32>
    %185 = arith.mulf %184, %151 : vector<2x256xf32>
    %186 = arith.addf %182, %185 : vector<2x256xf32>
    %cst_22 = arith.constant dense<0.000000e+00> : vector<256xf32>
    %187 = vector.multi_reduction <add>, %186, %cst_22 [0] : vector<2x256xf32> to vector<256xf32>
    %188 = vector.shape_cast %187 : vector<256xf32> to vector<1x256xf32>
    %c0_23 = arith.constant 0 : index
    %189 = memref.load %arg6[%c0_23] : memref<3xf32, #tpu.memory_space<smem>>
    %190 = vector.broadcast %189 : f32 to vector<1x256xf32>
    %191 = arith.addf %188, %190 : vector<1x256xf32>
    %192 = vector.extract_strided_slice %4 {offsets = [0, 9], sizes = [2, 1], strides = [1, 1]} : vector<2x128xf32> to vector<2x1xf32>
    %193 = vector.broadcast %192 : vector<2x1xf32> to vector<2x256xf32>
    %194 = arith.mulf %193, %130 : vector<2x256xf32>
    %195 = vector.extract_strided_slice %4 {offsets = [0, 10], sizes = [2, 1], strides = [1, 1]} : vector<2x128xf32> to vector<2x1xf32>
    %196 = vector.broadcast %195 : vector<2x1xf32> to vector<2x256xf32>
    %197 = arith.mulf %196, %133 : vector<2x256xf32>
    %198 = arith.addf %194, %197 : vector<2x256xf32>
    %199 = vector.extract_strided_slice %4 {offsets = [0, 11], sizes = [2, 1], strides = [1, 1]} : vector<2x128xf32> to vector<2x1xf32>
    %200 = vector.broadcast %199 : vector<2x1xf32> to vector<2x256xf32>
    %201 = arith.mulf %200, %136 : vector<2x256xf32>
    %202 = arith.addf %198, %201 : vector<2x256xf32>
    %203 = vector.extract_strided_slice %4 {offsets = [0, 12], sizes = [2, 1], strides = [1, 1]} : vector<2x128xf32> to vector<2x1xf32>
    %204 = vector.broadcast %203 : vector<2x1xf32> to vector<2x256xf32>
    %205 = arith.mulf %204, %139 : vector<2x256xf32>
    %206 = arith.addf %202, %205 : vector<2x256xf32>
    %207 = vector.extract_strided_slice %4 {offsets = [0, 13], sizes = [2, 1], strides = [1, 1]} : vector<2x128xf32> to vector<2x1xf32>
    %208 = vector.broadcast %207 : vector<2x1xf32> to vector<2x256xf32>
    %209 = arith.mulf %208, %127 : vector<2x256xf32>
    %210 = arith.addf %206, %209 : vector<2x256xf32>
    %211 = vector.extract_strided_slice %4 {offsets = [0, 14], sizes = [2, 1], strides = [1, 1]} : vector<2x128xf32> to vector<2x1xf32>
    %212 = vector.broadcast %211 : vector<2x1xf32> to vector<2x256xf32>
    %213 = arith.mulf %212, %142 : vector<2x256xf32>
    %214 = arith.addf %210, %213 : vector<2x256xf32>
    %215 = vector.extract_strided_slice %4 {offsets = [0, 15], sizes = [2, 1], strides = [1, 1]} : vector<2x128xf32> to vector<2x1xf32>
    %216 = vector.broadcast %215 : vector<2x1xf32> to vector<2x256xf32>
    %217 = arith.mulf %216, %145 : vector<2x256xf32>
    %218 = arith.addf %214, %217 : vector<2x256xf32>
    %219 = vector.extract_strided_slice %4 {offsets = [0, 16], sizes = [2, 1], strides = [1, 1]} : vector<2x128xf32> to vector<2x1xf32>
    %220 = vector.broadcast %219 : vector<2x1xf32> to vector<2x256xf32>
    %221 = arith.mulf %220, %148 : vector<2x256xf32>
    %222 = arith.addf %218, %221 : vector<2x256xf32>
    %223 = vector.extract_strided_slice %4 {offsets = [0, 17], sizes = [2, 1], strides = [1, 1]} : vector<2x128xf32> to vector<2x1xf32>
    %224 = vector.broadcast %223 : vector<2x1xf32> to vector<2x256xf32>
    %225 = arith.mulf %224, %151 : vector<2x256xf32>
    %226 = arith.addf %222, %225 : vector<2x256xf32>
    %cst_24 = arith.constant dense<0.000000e+00> : vector<256xf32>
    %227 = vector.multi_reduction <add>, %226, %cst_24 [0] : vector<2x256xf32> to vector<256xf32>
    %228 = vector.shape_cast %227 : vector<256xf32> to vector<1x256xf32>
    %c1_25 = arith.constant 1 : index
    %229 = memref.load %arg6[%c1_25] : memref<3xf32, #tpu.memory_space<smem>>
    %230 = vector.broadcast %229 : f32 to vector<1x256xf32>
    %231 = arith.addf %228, %230 : vector<1x256xf32>
    %232 = vector.extract_strided_slice %4 {offsets = [0, 18], sizes = [2, 1], strides = [1, 1]} : vector<2x128xf32> to vector<2x1xf32>
    %233 = vector.broadcast %232 : vector<2x1xf32> to vector<2x256xf32>
    %234 = arith.mulf %233, %130 : vector<2x256xf32>
    %235 = vector.extract_strided_slice %4 {offsets = [0, 19], sizes = [2, 1], strides = [1, 1]} : vector<2x128xf32> to vector<2x1xf32>
    %236 = vector.broadcast %235 : vector<2x1xf32> to vector<2x256xf32>
    %237 = arith.mulf %236, %133 : vector<2x256xf32>
    %238 = arith.addf %234, %237 : vector<2x256xf32>
    %239 = vector.extract_strided_slice %4 {offsets = [0, 20], sizes = [2, 1], strides = [1, 1]} : vector<2x128xf32> to vector<2x1xf32>
    %240 = vector.broadcast %239 : vector<2x1xf32> to vector<2x256xf32>
    %241 = arith.mulf %240, %136 : vector<2x256xf32>
    %242 = arith.addf %238, %241 : vector<2x256xf32>
    %243 = vector.extract_strided_slice %4 {offsets = [0, 21], sizes = [2, 1], strides = [1, 1]} : vector<2x128xf32> to vector<2x1xf32>
    %244 = vector.broadcast %243 : vector<2x1xf32> to vector<2x256xf32>
    %245 = arith.mulf %244, %139 : vector<2x256xf32>
    %246 = arith.addf %242, %245 : vector<2x256xf32>
    %247 = vector.extract_strided_slice %4 {offsets = [0, 22], sizes = [2, 1], strides = [1, 1]} : vector<2x128xf32> to vector<2x1xf32>
    %248 = vector.broadcast %247 : vector<2x1xf32> to vector<2x256xf32>
    %249 = arith.mulf %248, %127 : vector<2x256xf32>
    %250 = arith.addf %246, %249 : vector<2x256xf32>
    %251 = vector.extract_strided_slice %4 {offsets = [0, 23], sizes = [2, 1], strides = [1, 1]} : vector<2x128xf32> to vector<2x1xf32>
    %252 = vector.broadcast %251 : vector<2x1xf32> to vector<2x256xf32>
    %253 = arith.mulf %252, %142 : vector<2x256xf32>
    %254 = arith.addf %250, %253 : vector<2x256xf32>
    %255 = vector.extract_strided_slice %4 {offsets = [0, 24], sizes = [2, 1], strides = [1, 1]} : vector<2x128xf32> to vector<2x1xf32>
    %256 = vector.broadcast %255 : vector<2x1xf32> to vector<2x256xf32>
    %257 = arith.mulf %256, %145 : vector<2x256xf32>
    %258 = arith.addf %254, %257 : vector<2x256xf32>
    %259 = vector.extract_strided_slice %4 {offsets = [0, 25], sizes = [2, 1], strides = [1, 1]} : vector<2x128xf32> to vector<2x1xf32>
    %260 = vector.broadcast %259 : vector<2x1xf32> to vector<2x256xf32>
    %261 = arith.mulf %260, %148 : vector<2x256xf32>
    %262 = arith.addf %258, %261 : vector<2x256xf32>
    %263 = vector.extract_strided_slice %4 {offsets = [0, 26], sizes = [2, 1], strides = [1, 1]} : vector<2x128xf32> to vector<2x1xf32>
    %264 = vector.broadcast %263 : vector<2x1xf32> to vector<2x256xf32>
    %265 = arith.mulf %264, %151 : vector<2x256xf32>
    %266 = arith.addf %262, %265 : vector<2x256xf32>
    %cst_26 = arith.constant dense<0.000000e+00> : vector<256xf32>
    %267 = vector.multi_reduction <add>, %266, %cst_26 [0] : vector<2x256xf32> to vector<256xf32>
    %268 = vector.shape_cast %267 : vector<256xf32> to vector<1x256xf32>
    %c2 = arith.constant 2 : index
    %269 = memref.load %arg6[%c2] : memref<3xf32, #tpu.memory_space<smem>>
    %270 = vector.broadcast %269 : f32 to vector<1x256xf32>
    %271 = arith.addf %268, %270 : vector<1x256xf32>
    %272 = tpu.concatenate %191, %231, %271 in 0 : vector<1x256xf32>, vector<1x256xf32>, vector<1x256xf32> -> vector<3x256xf32>
    %c0_27 = arith.constant 0 : index
    %c0_28 = arith.constant 0 : index
    %c0_29 = arith.constant 0 : index
    %273 = vector.load %arg7[%c0_27, %c0_28, %c0_29] : memref<1x3x256xf32, #tpu.memory_space<vmem>>, vector<1x3x256xf32>
    %274 = vector.shape_cast %273 : vector<1x3x256xf32> to vector<3x256xf32>
    %275 = vector.shape_cast %272 : vector<3x256xf32> to vector<1x3x256xf32>
    tpu.vector_store %arg7[%c0_27, %c0_28, %c0_29], %275 {strides = array<i32>} : memref<1x3x256xf32, #tpu.memory_space<vmem>>, vector<1x3x256xf32>,
    return
  }
  func.func @transform_0(%arg0: i32) -> (i32, i32, i32) {
    %c0_i32 = arith.constant 0 : i32
    %c0_i32_0 = arith.constant 0 : i32
    %c0_i32_1 = arith.constant 0 : i32
    return %arg0, %c0_i32, %c0_i32_0 : i32, i32, i32
  }
  func.func @transform_1(%arg0: i32) -> (i32, i32) {
    %c0_i32 = arith.constant 0 : i32
    %c0_i32_0 = arith.constant 0 : i32
    %c0_i32_1 = arith.constant 0 : i32
    return %c0_i32, %c0_i32_0 : i32, i32
  }
  func.func @transform_2(%arg0: i32) -> (i32, i32) {
    %c0_i32 = arith.constant 0 : i32
    %c0_i32_0 = arith.constant 0 : i32
    %c0_i32_1 = arith.constant 0 : i32
    return %c0_i32, %c0_i32_0 : i32, i32
  }
  func.func @transform_3(%arg0: i32) -> (i32, i32) {
    %c0_i32 = arith.constant 0 : i32
    %c0_i32_0 = arith.constant 0 : i32
    %c0_i32_1 = arith.constant 0 : i32
    return %c0_i32, %c0_i32_0 : i32, i32
  }
  func.func @transform_4(%arg0: i32) -> i32 {
    %c0_i32 = arith.constant 0 : i32
    %c0_i32_0 = arith.constant 0 : i32
    return %c0_i32 : i32
  }
  func.func @transform_5(%arg0: i32) -> i32 {
    %c0_i32 = arith.constant 0 : i32
    %c0_i32_0 = arith.constant 0 : i32
    return %c0_i32 : i32
  }
  func.func @transform_6(%arg0: i32) -> (i32, i32, i32) {
    %c0_i32 = arith.constant 0 : i32
    %c0_i32_0 = arith.constant 0 : i32
    %c0_i32_1 = arith.constant 0 : i32
    return %arg0, %c0_i32, %c0_i32_0 : i32, i32, i32
  }
}

</mosaic_0001>

<llo_original>
// kernel: tpu_custom_call.1
$region0: #{tpu_custom_call.1}
  #allocation0 [shape = 'u32[]', space=smem, size = 0x4, offset = 0x4, fixed_abs, tag = 'smem constant byte address 0x4 - core index']
  #allocation1 [shape = 'u32[144,128]{1,0:T(1,128)}', space=vmem, size = 0x12000, scoped, tag = 'internal scratch']
  %s0 = inlined_call_operand.vmem [shape: f32[2,3,256], index: 0, kind: input, shape index: {}]
  %s1 = inlined_call_operand.hbm [shape: f32[9,256], index: 1, kind: input, shape index: {}]
  %s2 = inlined_call_operand.vmem [shape: f32[3,128], index: 2, kind: input, shape index: {}]
  %s3 = inlined_call_operand.vmem [shape: f32[2,128], index: 3, kind: input, shape index: {}]
  %s4 = inlined_call_operand.vmem [shape: f32[2], index: 4, kind: input, shape index: {}]
  %s5 = inlined_call_operand.vmem [shape: f32[3], index: 5, kind: input, shape index: {}]
  %s6 = inlined_call_operand.vmem [shape: f32[2,3,256], index: 6, kind: output, shape index: {}]
  %s7 = sld [smem:[#allocation0]]
  $region69: #{tpu_custom_call.1} parent=0
    _
  %s9 = ssub.s32 1, %s7
  %s10 = scalar_select 0, %s9, %s7
  $region1: #{tpu_custom_call.1} parent=0
    #allocation2 [shape = 'u8[16384]{0}', space=vmem, size = 0x4000, scoped, tag = 'input window, operand 1, single buffered']
    #allocation3 [shape = 's32[2]{0}', space=sflag, size = 0x8, scoped, tag = 'scoped memory for tpu_custom_call.1']
    #allocation4 [shape = 's32[2]{0}', space=sflag, size = 0x8, scoped, tag = 'scoped memory for tpu_custom_call.1']
    #allocation5 [shape = 'u8[512]{0}', space=smem, size = 0x200, scoped, tag = 'input window, operand 4, single buffered']
    #allocation6 [shape = 'u8[512]{0}', space=smem, size = 0x200, scoped, tag = 'input window, operand 5, single buffered']
    #allocation7 [shape = 's32[1]{0}', space=sflag, size = 0x4, scoped, tag = 'scoped memory for tpu_custom_call.1']
    %11 = vsyncpa [#allocation3], 0
    %12 = vsyncpa [#allocation4], 0
    %13 = vsyncpa [#allocation7], 0
    loop: start=0, step=1, limit=4
    $region2: #{tpu_custom_call.1} parent=1 // loop_pre_header
      _
    $region3: #{tpu_custom_call.1} parent=1 // loop_header
      %s15 = sphi 0, %s19
      %p16 = scmp.ge.s32.totalorder %s15, 4
      %s25 = sphi 0, %s27
      %s28 = sphi 0, %s25
      %s29 = sphi 0, %s28
      %s45 = sphi 0, %s29
      %s49 = sphi 0, %s49
      %s51 = sphi 0, %s49
      %s52 = sphi 0, %s51
      %s66 = sphi 0, %s52
      %s70 = sphi 0, %s70
      %s72 = sphi 0, %s70
      %s73 = sphi 0, %s72
      %s87 = sphi 0, %s73
      %s91 = sphi 0, %s91
      %s93 = sphi 0, %s91
      %s94 = sphi 0, %s93
      %s108 = sphi 0, %s94
      %s112 = sphi 0, %s112
      %s114 = sphi 0, %s112
      %s115 = sphi 0, %s114
      %s129 = sphi 0, %s115
      %s133 = sphi 0, %s133
      %s135 = sphi 0, %s133
      %s136 = sphi 0, %s135
      %s150 = sphi 0, %s136
      %s156 = sphi 0, %s158
      %s159 = sphi 0, %s156
      %s160 = sphi 0, %s159
      %s176 = sphi 0, %s160
    $region4: #{tpu_custom_call.1} parent=1 // loop_header_branch
      %18 = sbr.rel (%p16) target = $region8
    $region5: #{tpu_custom_call.1} parent=1 // loop_body
      %s20 = ssub.s32 %s15, 1
      %s21 = ssub.s32 %s15, 2
      %s22 = sadd.s32 %s15, 1
      %s23 = ssub.s32 %s15, %s22
      %p24 = scmp.eq.s32.totalorder %s23, 0
      %s26 = sadd.s32 %s25, 1
      %s27 = scalar_select %p24, %s25, %s26
      %p30 = pneg %p24
      %p31 = scmp.eq.s32.totalorder %s15, 1
      %p32 = por %p30, %p31
      %p33 = scmp.ne.s32.totalorder %s25, %s28
      %p34 = scmp.eq.s32.totalorder %s15, 0
      %p35 = por %p33, %p34
      %p36 = scmp.ne.s32.totalorder %s25, %s28
      %p37 = scmp.eq.s32.totalorder %s20, 1
      %p38 = por %p36, %p37
      %p39 = scmp.ne.s32.totalorder %s28, %s29
      %p40 = scmp.eq.s32.totalorder %s20, 0
      %p41 = por %p39, %p40
      %p42 = scmp.ne.s32.totalorder %s28, %s29
      %p43 = scmp.eq.s32.totalorder %s21, 1
      %p44 = por %p42, %p43
      %p46 = scmp.ne.s32.totalorder %s29, %s45
      %p47 = scmp.eq.s32.totalorder %s21, 0
      %p48 = por %p46, %p47
      %s50 = sadd.s32 %s49, 1
      %p53 = scmp.eq.s32.totalorder %s15, 1
      %p54 = scmp.ne.s32.totalorder %s49, %s51
      %p55 = scmp.eq.s32.totalorder %s15, 0
      %p56 = por %p54, %p55
      %p57 = scmp.ne.s32.totalorder %s49, %s51
      %p58 = scmp.eq.s32.totalorder %s20, 1
      %p59 = por %p57, %p58
      %p60 = scmp.ne.s32.totalorder %s51, %s52
      %p61 = scmp.eq.s32.totalorder %s20, 0
      %p62 = por %p60, %p61
      %p63 = scmp.ne.s32.totalorder %s51, %s52
      %p64 = scmp.eq.s32.totalorder %s21, 1
      %p65 = por %p63, %p64
      %p67 = scmp.ne.s32.totalorder %s52, %s66
      %p68 = scmp.eq.s32.totalorder %s21, 0
      %p69 = por %p67, %p68
      %s71 = sadd.s32 %s70, 1
      %p74 = scmp.eq.s32.totalorder %s15, 1
      %p75 = scmp.ne.s32.totalorder %s70, %s72
      %p76 = scmp.eq.s32.totalorder %s15, 0
      %p77 = por %p75, %p76
      %p78 = scmp.ne.s32.totalorder %s70, %s72
      %p79 = scmp.eq.s32.totalorder %s20, 1
      %p80 = por %p78, %p79
      %p81 = scmp.ne.s32.totalorder %s72, %s73
      %p82 = scmp.eq.s32.totalorder %s20, 0
      %p83 = por %p81, %p82
      %p84 = scmp.ne.s32.totalorder %s72, %s73
      %p85 = scmp.eq.s32.totalorder %s21, 1
      %p86 = por %p84, %p85
      %p88 = scmp.ne.s32.totalorder %s73, %s87
      %p89 = scmp.eq.s32.totalorder %s21, 0
      %p90 = por %p88, %p89
      %s92 = sadd.s32 %s91, 1
      %p95 = scmp.eq.s32.totalorder %s15, 1
      %p96 = scmp.ne.s32.totalorder %s91, %s93
      %p97 = scmp.eq.s32.totalorder %s15, 0
      %p98 = por %p96, %p97
      %p99 = scmp.ne.s32.totalorder %s91, %s93
      %p100 = scmp.eq.s32.totalorder %s20, 1
      %p101 = por %p99, %p100
      %p102 = scmp.ne.s32.totalorder %s93, %s94
      %p103 = scmp.eq.s32.totalorder %s20, 0
      %p104 = por %p102, %p103
      %p105 = scmp.ne.s32.totalorder %s93, %s94
      %p106 = scmp.eq.s32.totalorder %s21, 1
      %p107 = por %p105, %p106
      %p109 = scmp.ne.s32.totalorder %s94, %s108
      %p110 = scmp.eq.s32.totalorder %s21, 0
      %p111 = por %p109, %p110
      %s113 = sadd.s32 %s112, 1
      %p116 = scmp.eq.s32.totalorder %s15, 1
      %p117 = scmp.ne.s32.totalorder %s112, %s114
      %p118 = scmp.eq.s32.totalorder %s15, 0
      %p119 = por %p117, %p118
      %p120 = scmp.ne.s32.totalorder %s112, %s114
      %p121 = scmp.eq.s32.totalorder %s20, 1
      %p122 = por %p120, %p121
      %p123 = scmp.ne.s32.totalorder %s114, %s115
      %p124 = scmp.eq.s32.totalorder %s20, 0
      %p125 = por %p123, %p124
      %p126 = scmp.ne.s32.totalorder %s114, %s115
      %p127 = scmp.eq.s32.totalorder %s21, 1
      %p128 = por %p126, %p127
      %p130 = scmp.ne.s32.totalorder %s115, %s129
      %p131 = scmp.eq.s32.totalorder %s21, 0
      %p132 = por %p130, %p131
      %s134 = sadd.s32 %s133, 1
      %p137 = scmp.eq.s32.totalorder %s15, 1
      %p138 = scmp.ne.s32.totalorder %s133, %s135
      %p139 = scmp.eq.s32.totalorder %s15, 0
      %p140 = por %p138, %p139
      %p141 = scmp.ne.s32.totalorder %s133, %s135
      %p142 = scmp.eq.s32.totalorder %s20, 1
      %p143 = por %p141, %p142
      %p144 = scmp.ne.s32.totalorder %s135, %s136
      %p145 = scmp.eq.s32.totalorder %s20, 0
      %p146 = por %p144, %p145
      %p147 = scmp.ne.s32.totalorder %s135, %s136
      %p148 = scmp.eq.s32.totalorder %s21, 1
      %p149 = por %p147, %p148
      %p151 = scmp.ne.s32.totalorder %s136, %s150
      %p152 = scmp.eq.s32.totalorder %s21, 0
      %p153 = por %p151, %p152
      %s154 = ssub.s32 %s15, %s22
      %p155 = scmp.eq.s32.totalorder %s154, 0
      %s157 = sadd.s32 %s156, 1
      %s158 = scalar_select %p155, %s156, %s157
      %p161 = pneg %p155
      %p162 = scmp.eq.s32.totalorder %s15, 1
      %p163 = por %p161, %p162
      %p164 = scmp.ne.s32.totalorder %s156, %s159
      %p165 = scmp.eq.s32.totalorder %s15, 0
      %p166 = por %p164, %p165
      %p167 = scmp.ne.s32.totalorder %s156, %s159
      %p168 = scmp.eq.s32.totalorder %s20, 1
      %p169 = por %p167, %p168
      %p170 = scmp.ne.s32.totalorder %s159, %s160
      %p171 = scmp.eq.s32.totalorder %s20, 0
      %p172 = por %p170, %p171
      %p173 = scmp.ne.s32.totalorder %s159, %s160
      %p174 = scmp.eq.s32.totalorder %s21, 1
      %p175 = por %p173, %p174
      %p177 = scmp.ne.s32.totalorder %s160, %s176
      %p178 = scmp.eq.s32.totalorder %s21, 0
      %p179 = por %p177, %p178
      %p180 = scmp.le.s32.totalorder 1, %s15
      %p181 = scmp.lt.s32.totalorder %s15, 3
      %p182 = pnand %p180, %p181
      %p183 = pneg %p182
      // Predicated region
      $region9: #{tpu_custom_call.1} parent=5 // pred_check
        _
      $region10: #{tpu_custom_call.1} parent=5 // pred_check_branch
        %185 = sbr.rel (%p182) target = $region12
      $region11: #{tpu_custom_call.1} parent=5 // pred_region
        %s186 = ssub.s32 %s15, 1
        // Predicated region
        $region13: #{tpu_custom_call.1} parent=11 // pred_check
          %p187 = pneg %p62
        $region14: #{tpu_custom_call.1} parent=11 // pred_check_branch
          %189 = sbr.rel (%p187) target = $region16
        $region15: #{tpu_custom_call.1} parent=11 // pred_region
          %s191 = ssub.s32 512, 512
          %192 = vsyncadd [#allocation3], %s191
          %s193 = sshll.u32 [#allocation2], 4
          %s194 = int_to_ptr.vmem [resolvable:$true] %s193
          %199 = dma.hbm_to_vmem [thread:$0]  %s1, 512, %s194, [#allocation3], 256, 256, 16
        $region16: #{tpu_custom_call.1} parent=11 // pred_fallthru
          _
        // Predicated region
        $region17: #{tpu_custom_call.1} parent=11 // pred_check
          %p200 = pneg %p83
        $region18: #{tpu_custom_call.1} parent=11 // pred_check_branch
          %202 = sbr.rel (%p200) target = $region20
        $region19: #{tpu_custom_call.1} parent=11 // pred_region
          _
        $region20: #{tpu_custom_call.1} parent=11 // pred_fallthru
          _
        // Predicated region
        $region21: #{tpu_custom_call.1} parent=11 // pred_check
          %p203 = pneg %p104
        $region22: #{tpu_custom_call.1} parent=11 // pred_check_branch
          %205 = sbr.rel (%p203) target = $region24
        $region23: #{tpu_custom_call.1} parent=11 // pred_region
          _
        $region24: #{tpu_custom_call.1} parent=11 // pred_fallthru
          _
        // Predicated region
        $region25: #{tpu_custom_call.1} parent=11 // pred_check
          %p206 = pneg %p125
        $region26: #{tpu_custom_call.1} parent=11 // pred_check_branch
          %208 = sbr.rel (%p206) target = $region28
        $region27: #{tpu_custom_call.1} parent=11 // pred_region
          %s210 = ssub.s32 16, 16
          %211 = vsyncadd [#allocation4], %s210
          %s213 = sshll.u32 %s4, 4
          %s214 = int_to_ptr.vmem [resolvable:$true] %s213
          %216 = dma.vmem_to_smem %s214, 16, [#allocation5], [#allocation4]
        $region28: #{tpu_custom_call.1} parent=11 // pred_fallthru
          _
        // Predicated region
        $region29: #{tpu_custom_call.1} parent=11 // pred_check
          %p217 = pneg %p146
        $region30: #{tpu_custom_call.1} parent=11 // pred_check_branch
          %219 = sbr.rel (%p217) target = $region32
        $region31: #{tpu_custom_call.1} parent=11 // pred_region
          %s221 = ssub.s32 16, 16
          %222 = vsyncadd [#allocation7], %s221
          %s224 = sshll.u32 %s5, 4
          %s225 = int_to_ptr.vmem [resolvable:$true] %s224
          %227 = dma.vmem_to_smem %s225, 16, [#allocation6], [#allocation7]
        $region32: #{tpu_custom_call.1} parent=11 // pred_fallthru
          _
      $region12: #{tpu_custom_call.1} parent=5 // pred_fallthru
        _
      %p228 = scmp.lt.s32.totalorder %s15, 2
      // Predicated region
      $region33: #{tpu_custom_call.1} parent=5 // pred_check
        %p229 = pneg %p228
      $region34: #{tpu_custom_call.1} parent=5 // pred_check_branch
        %231 = sbr.rel (%p229) target = $region36
      $region35: #{tpu_custom_call.1} parent=5 // pred_region
        // Predicated region
        $region37: #{tpu_custom_call.1} parent=35 // pred_check
          %p232 = pneg %p35
        $region38: #{tpu_custom_call.1} parent=35 // pred_check_branch
          %234 = sbr.rel (%p232) target = $region40
        $region39: #{tpu_custom_call.1} parent=35 // pred_region
          %p235 = scmp.lt.s32.totalorder %s15, 1
          %s236 = scalar_select %p235, %s15, 1
          %s237 = smul.addr %s236, 2
          %s238 = smul.addr %s237, 4
          %s239 = scalar_lea.vmem %s0, %s238
        $region40: #{tpu_custom_call.1} parent=35 // pred_fallthru
          _
      $region36: #{tpu_custom_call.1} parent=5 // pred_fallthru
        _
      %p240 = scmp.le.s32.totalorder 1, %s15
      %p241 = scmp.lt.s32.totalorder %s15, 3
      %p242 = pnand %p240, %p241
      %p243 = pneg %p242
      // Predicated region
      $region41: #{tpu_custom_call.1} parent=5 // pred_check
        _
      $region42: #{tpu_custom_call.1} parent=5 // pred_check_branch
        %245 = sbr.rel (%p242) target = $region44
      $region43: #{tpu_custom_call.1} parent=5 // pred_region
        %s246 = ssub.s32 %s15, 1
        // Predicated region
        $region45: #{tpu_custom_call.1} parent=43 // pred_check
          %p247 = pneg %p62
        $region46: #{tpu_custom_call.1} parent=43 // pred_check_branch
          %249 = sbr.rel (%p247) target = $region48
        $region47: #{tpu_custom_call.1} parent=43 // pred_region
          %250 = dma.done [#allocation3], 512
        $region48: #{tpu_custom_call.1} parent=43 // pred_fallthru
          _
        // Predicated region
        $region49: #{tpu_custom_call.1} parent=43 // pred_check
          %p251 = pneg %p125
        $region50: #{tpu_custom_call.1} parent=43 // pred_check_branch
          %253 = sbr.rel (%p251) target = $region52
        $region51: #{tpu_custom_call.1} parent=43 // pred_region
          %254 = dma.done [#allocation4], 16
        $region52: #{tpu_custom_call.1} parent=43 // pred_fallthru
          _
        // Predicated region
        $region53: #{tpu_custom_call.1} parent=43 // pred_check
          %p255 = pneg %p146
        $region54: #{tpu_custom_call.1} parent=43 // pred_check_branch
          %257 = sbr.rel (%p255) target = $region56
        $region55: #{tpu_custom_call.1} parent=43 // pred_region
          %258 = dma.done [#allocation7], 16
        $region56: #{tpu_custom_call.1} parent=43 // pred_fallthru
          _
        %259 = sfence
        %p260 = scmp.lt.s32.totalorder %s20, 1
        %s261 = scalar_select %p260, %s20, 1
        %s262 = smul.addr %s261, 2
        %s263 = smul.addr %s262, 4
        %s264 = scalar_lea.vmem %s0, %s263
        %p265 = pneg %p41
        %p266 = pneg %p38
        %p267 = pneg %p62
        %p268 = pneg %p59
        %p269 = pneg %p83
        %p270 = pneg %p80
        %p271 = pneg %p104
        %p272 = pneg %p101
        %p273 = pneg %p125
        %p274 = pneg %p122
        %p275 = pneg %p146
        %p276 = pneg %p143
        %p277 = pneg %p172
        %p278 = pneg %p169
        %p279 = scmp.lt.s32.totalorder %s20, 1
        %s280 = scalar_select %p279, %s20, 1
        %s281 = smul.addr %s280, 2
        %s282 = smul.addr %s281, 4
        %s283 = scalar_lea.vmem %s6, %s282
        %p284 = scmp.lt.s32.totalorder %s20, 1
        %s285 = scalar_select %p284, %s20, 1
        %s286 = smul.addr %s285, 2
        %s287 = smul.addr %s286, 4
        %s288 = scalar_lea.vmem %s0, %s287
        %p289 = scmp.lt.s32.totalorder %s20, 1
        %s290 = scalar_select %p289, %s20, 1
        %s291 = smul.addr %s290, 2
        %s292 = smul.addr %s291, 4
        %s293 = scalar_lea.vmem %s6, %s292
        %v294 = vld [vmem:[%s288] sm:$0x77]
        %v295 = vld [vmem:[#allocation2] sm:$0xff]
        %v296 = vld [vmem:[#allocation2 + $0x8] sm:$0xff]
        %v297 = vld [vmem:[#allocation2 + $0x10] sm:$0x1]
        %v298 = vld [vmem:[#allocation2 + $0x18] sm:$0x1]
        %v299 = vld [vmem:[%s2] sm:$0x7]
        %v300 = vld [vmem:[%s3] sm:$0x3]
        %v302 = vcombine.high %v294, %v294
        %304 = vrot.lane.b32.xlu0 %v294, 17
        %v305 = vpop.permute.xlu0 %304
        %306 = vrot.lane.b32.xlu0 %v302, 17
        %v307 = vpop.permute.xlu0 %306
        %v308 = vlaneseq
        %v309 = vand.u32 %v308, 127
        %vm310 = vcmp.lt.s32.totalorder %v309, 17
        %v311 = vsel %vm310, %v305, %v307
        %v312 = vsel %vm310, %v307, %v305
        %v313 = vlaneseq
        %v314 = vshrl.u32 %v313, 7
        %v315 = vsub.s32 0, %v314
        %v316 = vrot.slane %v295, %v315
        %v317 = vlaneseq
        %v318 = vshrl.u32 %v317, 7
        %v319 = vsub.s32 0, %v318
        %v320 = vrot.slane %v296, %v319
        %v321 = vmul.f32 %v312, %v316
        %v322 = vmul.f32 %v311, %v320
        %323 = vrot.lane.b32.xlu0 %v294, 16
        %v324 = vpop.permute.xlu0 %323
        %325 = vrot.lane.b32.xlu0 %v302, 16
        %v326 = vpop.permute.xlu0 %325
        %vm327 = vcmp.lt.s32.totalorder %v309, 16
        %v328 = vsel %vm327, %v324, %v326
        %v329 = vsel %vm327, %v326, %v324
        %v330 = vlaneseq
        %v331 = vshrl.u32 %v330, 7
        %v332 = vsub.s32 1, %v331
        %v333 = vrot.slane %v295, %v332
        %v334 = vlaneseq
        %v335 = vshrl.u32 %v334, 7
        %v336 = vsub.s32 1, %v335
        %v337 = vrot.slane %v296, %v336
        %v338 = vmul.f32 %v329, %v333
        %v339 = vmul.f32 %v328, %v337
        %340 = vrot.lane.b32.xlu0 %v294, 15
        %v341 = vpop.permute.xlu0 %340
        %342 = vrot.lane.b32.xlu0 %v302, 15
        %v343 = vpop.permute.xlu0 %342
        %vm344 = vcmp.lt.s32.totalorder %v309, 15
        %v345 = vsel %vm344, %v341, %v343
        %v346 = vsel %vm344, %v343, %v341
        %v347 = vlaneseq
        %v348 = vshrl.u32 %v347, 7
        %v349 = vsub.s32 2, %v348
        %v350 = vrot.slane %v295, %v349
        %v351 = vlaneseq
        %v352 = vshrl.u32 %v351, 7
        %v353 = vsub.s32 2, %v352
        %v354 = vrot.slane %v296, %v353
        %v355 = vmul.f32 %v346, %v350
        %v356 = vmul.f32 %v345, %v354
        %357 = vrot.lane.b32.xlu0 %v294, 1
        %v358 = vpop.permute.xlu0 %357
        %359 = vrot.lane.b32.xlu0 %v302, 1
        %v360 = vpop.permute.xlu0 %359
        %vm361 = vcmp.lt.s32.totalorder %v309, 1
        %v362 = vsel %vm361, %v358, %v360
        %v363 = vsel %vm361, %v360, %v358
        %v364 = vlaneseq
        %v365 = vshrl.u32 %v364, 7
        %v366 = vsub.s32 3, %v365
        %v367 = vrot.slane %v295, %v366
        %v368 = vlaneseq
        %v369 = vshrl.u32 %v368, 7
        %v370 = vsub.s32 3, %v369
        %v371 = vrot.slane %v296, %v370
        %v372 = vmul.f32 %v363, %v367
        %v373 = vmul.f32 %v362, %v371
        %374 = vrot.lane.b32.xlu0 %v294, 127
        %v375 = vpop.permute.xlu0 %374
        %376 = vrot.lane.b32.xlu0 %v302, 127
        %v377 = vpop.permute.xlu0 %376
        %vm378 = vcmp.lt.s32.totalorder %v309, 127
        %v379 = vsel %vm378, %v375, %v377
        %v380 = vsel %vm378, %v377, %v375
        %v381 = vlaneseq
        %v382 = vshrl.u32 %v381, 7
        %v383 = vsub.s32 5, %v382
        %v384 = vrot.slane %v295, %v383
        %v385 = vlaneseq
        %v386 = vshrl.u32 %v385, 7
        %v387 = vsub.s32 5, %v386
        %v388 = vrot.slane %v296, %v387
        %v389 = vmul.f32 %v379, %v384
        %v390 = vmul.f32 %v380, %v388
        %391 = vrot.lane.b32.xlu0 %v294, 113
        %v392 = vpop.permute.xlu0 %391
        %393 = vrot.lane.b32.xlu0 %v302, 113
        %v394 = vpop.permute.xlu0 %393
        %vm395 = vcmp.lt.s32.totalorder %v309, 113
        %v396 = vsel %vm395, %v392, %v394
        %v397 = vsel %vm395, %v394, %v392
        %v398 = vlaneseq
        %v399 = vshrl.u32 %v398, 7
        %v400 = vsub.s32 6, %v399
        %v401 = vrot.slane %v295, %v400
        %v402 = vlaneseq
        %v403 = vshrl.u32 %v402, 7
        %v404 = vsub.s32 6, %v403
        %v405 = vrot.slane %v296, %v404
        %v406 = vmul.f32 %v396, %v401
        %v407 = vmul.f32 %v397, %v405
        %408 = vrot.lane.b32.xlu0 %v294, 112
        %v409 = vpop.permute.xlu0 %408
        %410 = vrot.lane.b32.xlu0 %v302, 112
        %v411 = vpop.permute.xlu0 %410
        %vm412 = vcmp.lt.s32.totalorder %v309, 112
        %v413 = vsel %vm412, %v409, %v411
        %v414 = vsel %vm412, %v411, %v409
        %v415 = vlaneseq
        %v416 = vshrl.u32 %v415, 7
        %v417 = vsub.s32 7, %v416
        %v418 = vrot.slane %v295, %v417
        %v419 = vlaneseq
        %v420 = vshrl.u32 %v419, 7
        %v421 = vsub.s32 7, %v420
        %v422 = vrot.slane %v296, %v421
        %v423 = vmul.f32 %v413, %v418
        %v424 = vmul.f32 %v414, %v422
        %425 = vrot.lane.b32.xlu0 %v294, 111
        %v426 = vpop.permute.xlu0 %425
        %427 = vrot.lane.b32.xlu0 %v302, 111
        %v428 = vpop.permute.xlu0 %427
        %vm429 = vcmp.lt.s32.totalorder %v309, 111
        %v430 = vsel %vm429, %v426, %v428
        %v431 = vsel %vm429, %v428, %v426
        %v432 = vlaneseq
        %v433 = vshrl.u32 %v432, 7
        %v434 = vsub.s32 0, %v433
        %v435 = vrot.slane %v297, %v434
        %v436 = vlaneseq
        %v437 = vshrl.u32 %v436, 7
        %v438 = vsub.s32 0, %v437
        %v439 = vrot.slane %v298, %v438
        %v440 = vmul.f32 %v430, %v435
        %v441 = vmul.f32 %v431, %v439
        %443 = vset.pattern.permute.xlu0 0
        %444 = vperm.xlu0 %443, %v299
        %v445 = vpop.permute.xlu0 %444
        %v447 = vmul.f32 %v445, %v321
        %v448 = vmul.f32 %v445, %v322
        %449 = vset.pattern.permute.xlu0 1
        %450 = vperm.xlu0 %449, %v299
        %v451 = vpop.permute.xlu0 %450
        %v453 = vmul.f32 %v451, %v338
        %v454 = vmul.f32 %v451, %v339
        %v455 = vadd.f32 %v447, %v453
        %v456 = vadd.f32 %v448, %v454
        %457 = vset.pattern.permute.xlu0 2
        %458 = vperm.xlu0 %457, %v299
        %v459 = vpop.permute.xlu0 %458
        %v461 = vmul.f32 %v459, %v355
        %v462 = vmul.f32 %v459, %v356
        %v463 = vadd.f32 %v455, %v461
        %v464 = vadd.f32 %v456, %v462
        %465 = vset.pattern.permute.xlu0 3
        %466 = vperm.xlu0 %465, %v299
        %v467 = vpop.permute.xlu0 %466
        %v469 = vmul.f32 %v467, %v372
        %v470 = vmul.f32 %v467, %v373
        %v471 = vadd.f32 %v463, %v469
        %v472 = vadd.f32 %v464, %v470
        %473 = vset.pattern.permute.xlu0 4
        %474 = vperm.xlu0 %473, %v299
        %v475 = vpop.permute.xlu0 %474
        %v477 = vmul.f32 %v475, %v294
        %v478 = vmul.f32 %v475, %v302
        %v479 = vadd.f32 %v471, %v477
        %v480 = vadd.f32 %v472, %v478
        %481 = vset.pattern.permute.xlu0 5
        %482 = vperm.xlu0 %481, %v299
        %v483 = vpop.permute.xlu0 %482
        %v485 = vmul.f32 %v483, %v389
        %v486 = vmul.f32 %v483, %v390
        %v487 = vadd.f32 %v479, %v485
        %v488 = vadd.f32 %v480, %v486
        %489 = vset.pattern.permute.xlu0 6
        %490 = vperm.xlu0 %489, %v299
        %v491 = vpop.permute.xlu0 %490
        %v493 = vmul.f32 %v491, %v406
        %v494 = vmul.f32 %v491, %v407
        %v495 = vadd.f32 %v487, %v493
        %v496 = vadd.f32 %v488, %v494
        %497 = vset.pattern.permute.xlu0 7
        %498 = vperm.xlu0 %497, %v299
        %v499 = vpop.permute.xlu0 %498
        %v501 = vmul.f32 %v499, %v423
        %v502 = vmul.f32 %v499, %v424
        %v503 = vadd.f32 %v495, %v501
        %v504 = vadd.f32 %v496, %v502
        %505 = vset.pattern.permute.xlu0 8
        %506 = vperm.xlu0 %505, %v299
        %v507 = vpop.permute.xlu0 %506
        %v509 = vmul.f32 %v507, %v440
        %v510 = vmul.f32 %v507, %v441
        %v511 = vadd.f32 %v503, %v509
        %v512 = vadd.f32 %v504, %v510
        %vm513 = vcmask 1042432
        %v514 = vsel %vm513, %v511, 0.0
        %v515 = vrot.slane %v514, 4
        %v516 = vadd.f32 %v514, %v515
        %v517 = vrot.slane %v516, 2
        %v518 = vadd.f32 %v516, %v517
        %v519 = vrot.slane %v518, 1
        %v520 = vadd.f32 %v518, %v519
        %v521 = vsel %vm513, %v512, 0.0
        %v522 = vrot.slane %v521, 4
        %v523 = vadd.f32 %v521, %v522
        %v524 = vrot.slane %v523, 2
        %v525 = vadd.f32 %v523, %v524
        %v526 = vrot.slane %v525, 1
        %v527 = vadd.f32 %v525, %v526
        %s528 = sld [smem:[#allocation5]]
        %v529 = vstv %s528
        %v530 = vadd.f32 %v520, %v529
        %v531 = vadd.f32 %v527, %v529
        %vm532 = vcmp.gt.f32.partialorder %v530, 0.0
        %vm533 = vcmp.gt.f32.partialorder %v531, 0.0
        %v534 = vmul.f32 %v530, 0.01
        %v535 = vmul.f32 %v531, 0.01
        %v536 = vsel %vm532, %v530, %v534
        %v537 = vsel %vm533, %v531, %v535
        %538 = vset.pattern.permute.xlu0 9
        %539 = vperm.xlu0 %538, %v299
        %v540 = vpop.permute.xlu0 %539
        %v542 = vmul.f32 %v540, %v321
        %v543 = vmul.f32 %v540, %v322
        %544 = vset.pattern.permute.xlu0 10
        %545 = vperm.xlu0 %544, %v299
        %v546 = vpop.permute.xlu0 %545
        %v548 = vmul.f32 %v546, %v338
        %v549 = vmul.f32 %v546, %v339
        %v550 = vadd.f32 %v542, %v548
        %v551 = vadd.f32 %v543, %v549
        %552 = vset.pattern.permute.xlu0 11
        %553 = vperm.xlu0 %552, %v299
        %v554 = vpop.permute.xlu0 %553
        %v556 = vmul.f32 %v554, %v355
        %v557 = vmul.f32 %v554, %v356
        %v558 = vadd.f32 %v550, %v556
        %v559 = vadd.f32 %v551, %v557
        %560 = vset.pattern.permute.xlu0 12
        %561 = vperm.xlu0 %560, %v299
        %v562 = vpop.permute.xlu0 %561
        %v564 = vmul.f32 %v562, %v372
        %v565 = vmul.f32 %v562, %v373
        %v566 = vadd.f32 %v558, %v564
        %v567 = vadd.f32 %v559, %v565
        %568 = vset.pattern.permute.xlu0 13
        %569 = vperm.xlu0 %568, %v299
        %v570 = vpop.permute.xlu0 %569
        %v572 = vmul.f32 %v570, %v294
        %v573 = vmul.f32 %v570, %v302
        %v574 = vadd.f32 %v566, %v572
        %v575 = vadd.f32 %v567, %v573
        %576 = vset.pattern.permute.xlu0 14
        %577 = vperm.xlu0 %576, %v299
        %v578 = vpop.permute.xlu0 %577
        %v580 = vmul.f32 %v578, %v389
        %v581 = vmul.f32 %v578, %v390
        %v582 = vadd.f32 %v574, %v580
        %v583 = vadd.f32 %v575, %v581
        %584 = vset.pattern.permute.xlu0 15
        %585 = vperm.xlu0 %584, %v299
        %v586 = vpop.permute.xlu0 %585
        %v588 = vmul.f32 %v586, %v406
        %v589 = vmul.f32 %v586, %v407
        %v590 = vadd.f32 %v582, %v588
        %v591 = vadd.f32 %v583, %v589
        %592 = vset.pattern.permute.xlu0 16
        %593 = vperm.xlu0 %592, %v299
        %v594 = vpop.permute.xlu0 %593
        %v596 = vmul.f32 %v594, %v423
        %v597 = vmul.f32 %v594, %v424
        %v598 = vadd.f32 %v590, %v596
        %v599 = vadd.f32 %v591, %v597
        %600 = vset.pattern.permute.xlu0 17
        %601 = vperm.xlu0 %600, %v299
        %v602 = vpop.permute.xlu0 %601
        %v604 = vmul.f32 %v602, %v440
        %v605 = vmul.f32 %v602, %v441
        %v606 = vadd.f32 %v598, %v604
        %v607 = vadd.f32 %v599, %v605
        %v608 = vsel %vm513, %v606, 0.0
        %v609 = vrot.slane %v608, 4
        %v610 = vadd.f32 %v608, %v609
        %v611 = vrot.slane %v610, 2
        %v612 = vadd.f32 %v610, %v611
        %v613 = vrot.slane %v612, 1
        %v614 = vadd.f32 %v612, %v613
        %v615 = vsel %vm513, %v607, 0.0
        %v616 = vrot.slane %v615, 4
        %v617 = vadd.f32 %v615, %v616
        %v618 = vrot.slane %v617, 2
        %v619 = vadd.f32 %v617, %v618
        %v620 = vrot.slane %v619, 1
        %v621 = vadd.f32 %v619, %v620
        %s622 = sld [smem:[#allocation5 + $0x1]]
        %v623 = vstv %s622
        %v624 = vadd.f32 %v614, %v623
        %v625 = vadd.f32 %v621, %v623
        %vm626 = vcmp.gt.f32.partialorder %v624, 0.0
        %vm627 = vcmp.gt.f32.partialorder %v625, 0.0
        %v628 = vmul.f32 %v624, 0.01
        %v629 = vmul.f32 %v625, 0.01
        %v630 = vsel %vm626, %v624, %v628
        %v631 = vsel %vm627, %v625, %v629
        %vm632 = vcmask 1040384
        %v633 = vsel %vm632, %v536, %v630
        %v634 = vsel %vm632, %v537, %v631
        %635 = vrot.lane.b32.xlu0 %v633, 17
        %v636 = vpop.permute.xlu0 %635
        %637 = vrot.lane.b32.xlu0 %v634, 17
        %v638 = vpop.permute.xlu0 %637
        %v639 = vsel %vm310, %v636, %v638
        %v640 = vsel %vm310, %v638, %v636
        %v641 = vmul.f32 %v640, %v316
        %v642 = vmul.f32 %v639, %v320
        %643 = vrot.lane.b32.xlu0 %v633, 16
        %v644 = vpop.permute.xlu0 %643
        %645 = vrot.lane.b32.xlu0 %v634, 16
        %v646 = vpop.permute.xlu0 %645
        %v647 = vsel %vm327, %v644, %v646
        %v648 = vsel %vm327, %v646, %v644
        %v649 = vmul.f32 %v648, %v333
        %v650 = vmul.f32 %v647, %v337
        %651 = vrot.lane.b32.xlu0 %v633, 15
        %v652 = vpop.permute.xlu0 %651
        %653 = vrot.lane.b32.xlu0 %v634, 15
        %v654 = vpop.permute.xlu0 %653
        %v655 = vsel %vm344, %v652, %v654
        %v656 = vsel %vm344, %v654, %v652
        %v657 = vmul.f32 %v656, %v350
        %v658 = vmul.f32 %v655, %v354
        %659 = vrot.lane.b32.xlu0 %v633, 1
        %v660 = vpop.permute.xlu0 %659
        %661 = vrot.lane.b32.xlu0 %v634, 1
        %v662 = vpop.permute.xlu0 %661
        %v663 = vsel %vm361, %v660, %v662
        %v664 = vsel %vm361, %v662, %v660
        %v665 = vmul.f32 %v664, %v367
        %v666 = vmul.f32 %v663, %v371
        %667 = vrot.lane.b32.xlu0 %v633, 127
        %v668 = vpop.permute.xlu0 %667
        %669 = vrot.lane.b32.xlu0 %v634, 127
        %v670 = vpop.permute.xlu0 %669
        %v671 = vsel %vm378, %v668, %v670
        %v672 = vsel %vm378, %v670, %v668
        %v673 = vmul.f32 %v671, %v384
        %v674 = vmul.f32 %v672, %v388
        %675 = vrot.lane.b32.xlu0 %v633, 113
        %v676 = vpop.permute.xlu0 %675
        %677 = vrot.lane.b32.xlu0 %v634, 113
        %v678 = vpop.permute.xlu0 %677
        %v679 = vsel %vm395, %v676, %v678
        %v680 = vsel %vm395, %v678, %v676
        %v681 = vmul.f32 %v679, %v401
        %v682 = vmul.f32 %v680, %v405
        %683 = vrot.lane.b32.xlu0 %v633, 112
        %v684 = vpop.permute.xlu0 %683
        %685 = vrot.lane.b32.xlu0 %v634, 112
        %v686 = vpop.permute.xlu0 %685
        %v687 = vsel %vm412, %v684, %v686
        %v688 = vsel %vm412, %v686, %v684
        %v689 = vmul.f32 %v687, %v418
        %v690 = vmul.f32 %v688, %v422
        %691 = vrot.lane.b32.xlu0 %v633, 111
        %v692 = vpop.permute.xlu0 %691
        %693 = vrot.lane.b32.xlu0 %v634, 111
        %v694 = vpop.permute.xlu0 %693
        %v695 = vsel %vm429, %v692, %v694
        %v696 = vsel %vm429, %v694, %v692
        %v697 = vmul.f32 %v695, %v435
        %v698 = vmul.f32 %v696, %v439
        %700 = vset.pattern.permute.xlu0 0
        %701 = vperm.xlu0 %700, %v300
        %v702 = vpop.permute.xlu0 %701
        %v704 = vmul.f32 %v702, %v641
        %v705 = vmul.f32 %v702, %v642
        %706 = vset.pattern.permute.xlu0 1
        %707 = vperm.xlu0 %706, %v300
        %v708 = vpop.permute.xlu0 %707
        %v710 = vmul.f32 %v708, %v649
        %v711 = vmul.f32 %v708, %v650
        %v712 = vadd.f32 %v704, %v710
        %v713 = vadd.f32 %v705, %v711
        %714 = vset.pattern.permute.xlu0 2
        %715 = vperm.xlu0 %714, %v300
        %v716 = vpop.permute.xlu0 %715
        %v718 = vmul.f32 %v716, %v657
        %v719 = vmul.f32 %v716, %v658
        %v720 = vadd.f32 %v712, %v718
        %v721 = vadd.f32 %v713, %v719
        %722 = vset.pattern.permute.xlu0 3
        %723 = vperm.xlu0 %722, %v300
        %v724 = vpop.permute.xlu0 %723
        %v726 = vmul.f32 %v724, %v665
        %v727 = vmul.f32 %v724, %v666
        %v728 = vadd.f32 %v720, %v726
        %v729 = vadd.f32 %v721, %v727
        %730 = vset.pattern.permute.xlu0 4
        %731 = vperm.xlu0 %730, %v300
        %v732 = vpop.permute.xlu0 %731
        %v734 = vmul.f32 %v732, %v633
        %v735 = vmul.f32 %v732, %v634
        %v736 = vadd.f32 %v728, %v734
        %v737 = vadd.f32 %v729, %v735
        %738 = vset.pattern.permute.xlu0 5
        %739 = vperm.xlu0 %738, %v300
        %v740 = vpop.permute.xlu0 %739
        %v742 = vmul.f32 %v740, %v673
        %v743 = vmul.f32 %v740, %v674
        %v744 = vadd.f32 %v736, %v742
        %v745 = vadd.f32 %v737, %v743
        %746 = vset.pattern.permute.xlu0 6
        %747 = vperm.xlu0 %746, %v300
        %v748 = vpop.permute.xlu0 %747
        %v750 = vmul.f32 %v748, %v681
        %v751 = vmul.f32 %v748, %v682
        %v752 = vadd.f32 %v744, %v750
        %v753 = vadd.f32 %v745, %v751
        %754 = vset.pattern.permute.xlu0 7
        %755 = vperm.xlu0 %754, %v300
        %v756 = vpop.permute.xlu0 %755
        %v758 = vmul.f32 %v756, %v689
        %v759 = vmul.f32 %v756, %v690
        %v760 = vadd.f32 %v752, %v758
        %v761 = vadd.f32 %v753, %v759
        %762 = vset.pattern.permute.xlu0 8
        %763 = vperm.xlu0 %762, %v300
        %v764 = vpop.permute.xlu0 %763
        %v766 = vmul.f32 %v764, %v697
        %v767 = vmul.f32 %v764, %v698
        %v768 = vadd.f32 %v760, %v766
        %v769 = vadd.f32 %v761, %v767
        %vm770 = vcmask 1041408
        %v771 = vsel %vm770, %v768, 0.0
        %v772 = vrot.slane %v771, 4
        %v773 = vadd.f32 %v771, %v772
        %v774 = vrot.slane %v773, 2
        %v775 = vadd.f32 %v773, %v774
        %v776 = vrot.slane %v775, 1
        %v777 = vadd.f32 %v775, %v776
        %v778 = vsel %vm770, %v769, 0.0
        %v779 = vrot.slane %v778, 4
        %v780 = vadd.f32 %v778, %v779
        %v781 = vrot.slane %v780, 2
        %v782 = vadd.f32 %v780, %v781
        %v783 = vrot.slane %v782, 1
        %v784 = vadd.f32 %v782, %v783
        %s785 = sld [smem:[#allocation6]]
        %v786 = vstv %s785
        %v787 = vadd.f32 %v777, %v786
        %v788 = vadd.f32 %v784, %v786
        %789 = vset.pattern.permute.xlu0 9
        %790 = vperm.xlu0 %789, %v300
        %v791 = vpop.permute.xlu0 %790
        %v793 = vmul.f32 %v791, %v641
        %v794 = vmul.f32 %v791, %v642
        %795 = vset.pattern.permute.xlu0 10
        %796 = vperm.xlu0 %795, %v300
        %v797 = vpop.permute.xlu0 %796
        %v799 = vmul.f32 %v797, %v649
        %v800 = vmul.f32 %v797, %v650
        %v801 = vadd.f32 %v793, %v799
        %v802 = vadd.f32 %v794, %v800
        %803 = vset.pattern.permute.xlu0 11
        %804 = vperm.xlu0 %803, %v300
        %v805 = vpop.permute.xlu0 %804
        %v807 = vmul.f32 %v805, %v657
        %v808 = vmul.f32 %v805, %v658
        %v809 = vadd.f32 %v801, %v807
        %v810 = vadd.f32 %v802, %v808
        %811 = vset.pattern.permute.xlu0 12
        %812 = vperm.xlu0 %811, %v300
        %v813 = vpop.permute.xlu0 %812
        %v815 = vmul.f32 %v813, %v665
        %v816 = vmul.f32 %v813, %v666
        %v817 = vadd.f32 %v809, %v815
        %v818 = vadd.f32 %v810, %v816
        %819 = vset.pattern.permute.xlu0 13
        %820 = vperm.xlu0 %819, %v300
        %v821 = vpop.permute.xlu0 %820
        %v823 = vmul.f32 %v821, %v633
        %v824 = vmul.f32 %v821, %v634
        %v825 = vadd.f32 %v817, %v823
        %v826 = vadd.f32 %v818, %v824
        %827 = vset.pattern.permute.xlu0 14
        %828 = vperm.xlu0 %827, %v300
        %v829 = vpop.permute.xlu0 %828
        %v831 = vmul.f32 %v829, %v673
        %v832 = vmul.f32 %v829, %v674
        %v833 = vadd.f32 %v825, %v831
        %v834 = vadd.f32 %v826, %v832
        %835 = vset.pattern.permute.xlu0 15
        %836 = vperm.xlu0 %835, %v300
        %v837 = vpop.permute.xlu0 %836
        %v839 = vmul.f32 %v837, %v681
        %v840 = vmul.f32 %v837, %v682
        %v841 = vadd.f32 %v833, %v839
        %v842 = vadd.f32 %v834, %v840
        %843 = vset.pattern.permute.xlu0 16
        %844 = vperm.xlu0 %843, %v300
        %v845 = vpop.permute.xlu0 %844
        %v847 = vmul.f32 %v845, %v689
        %v848 = vmul.f32 %v845, %v690
        %v849 = vadd.f32 %v841, %v847
        %v850 = vadd.f32 %v842, %v848
        %851 = vset.pattern.permute.xlu0 17
        %852 = vperm.xlu0 %851, %v300
        %v853 = vpop.permute.xlu0 %852
        %v855 = vmul.f32 %v853, %v697
        %v856 = vmul.f32 %v853, %v698
        %v857 = vadd.f32 %v849, %v855
        %v858 = vadd.f32 %v850, %v856
        %v859 = vsel %vm770, %v857, 0.0
        %v860 = vrot.slane %v859, 4
        %v861 = vadd.f32 %v859, %v860
        %v862 = vrot.slane %v861, 2
        %v863 = vadd.f32 %v861, %v862
        %v864 = vrot.slane %v863, 1
        %v865 = vadd.f32 %v863, %v864
        %v866 = vsel %vm770, %v858, 0.0
        %v867 = vrot.slane %v866, 4
        %v868 = vadd.f32 %v866, %v867
        %v869 = vrot.slane %v868, 2
        %v870 = vadd.f32 %v868, %v869
        %v871 = vrot.slane %v870, 1
        %v872 = vadd.f32 %v870, %v871
        %s873 = sld [smem:[#allocation6 + $0x1]]
        %v874 = vstv %s873
        %v875 = vadd.f32 %v865, %v874
        %v876 = vadd.f32 %v872, %v874
        %877 = vset.pattern.permute.xlu0 18
        %878 = vperm.xlu0 %877, %v300
        %v879 = vpop.permute.xlu0 %878
        %v881 = vmul.f32 %v879, %v641
        %v882 = vmul.f32 %v879, %v642
        %883 = vset.pattern.permute.xlu0 19
        %884 = vperm.xlu0 %883, %v300
        %v885 = vpop.permute.xlu0 %884
        %v887 = vmul.f32 %v885, %v649
        %v888 = vmul.f32 %v885, %v650
        %v889 = vadd.f32 %v881, %v887
        %v890 = vadd.f32 %v882, %v888
        %891 = vset.pattern.permute.xlu0 20
        %892 = vperm.xlu0 %891, %v300
        %v893 = vpop.permute.xlu0 %892
        %v895 = vmul.f32 %v893, %v657
        %v896 = vmul.f32 %v893, %v658
        %v897 = vadd.f32 %v889, %v895
        %v898 = vadd.f32 %v890, %v896
        %899 = vset.pattern.permute.xlu0 21
        %900 = vperm.xlu0 %899, %v300
        %v901 = vpop.permute.xlu0 %900
        %v903 = vmul.f32 %v901, %v665
        %v904 = vmul.f32 %v901, %v666
        %v905 = vadd.f32 %v897, %v903
        %v906 = vadd.f32 %v898, %v904
        %907 = vset.pattern.permute.xlu0 22
        %908 = vperm.xlu0 %907, %v300
        %v909 = vpop.permute.xlu0 %908
        %v911 = vmul.f32 %v909, %v633
        %v912 = vmul.f32 %v909, %v634
        %v913 = vadd.f32 %v905, %v911
        %v914 = vadd.f32 %v906, %v912
        %915 = vset.pattern.permute.xlu0 23
        %916 = vperm.xlu0 %915, %v300
        %v917 = vpop.permute.xlu0 %916
        %v919 = vmul.f32 %v917, %v673
        %v920 = vmul.f32 %v917, %v674
        %v921 = vadd.f32 %v913, %v919
        %v922 = vadd.f32 %v914, %v920
        %923 = vset.pattern.permute.xlu0 24
        %924 = vperm.xlu0 %923, %v300
        %v925 = vpop.permute.xlu0 %924
        %v927 = vmul.f32 %v925, %v681
        %v928 = vmul.f32 %v925, %v682
        %v929 = vadd.f32 %v921, %v927
        %v930 = vadd.f32 %v922, %v928
        %931 = vset.pattern.permute.xlu0 25
        %932 = vperm.xlu0 %931, %v300
        %v933 = vpop.permute.xlu0 %932
        %v935 = vmul.f32 %v933, %v689
        %v936 = vmul.f32 %v933, %v690
        %v937 = vadd.f32 %v929, %v935
        %v938 = vadd.f32 %v930, %v936
        %939 = vset.pattern.permute.xlu0 26
        %940 = vperm.xlu0 %939, %v300
        %v941 = vpop.permute.xlu0 %940
        %v943 = vmul.f32 %v941, %v697
        %v944 = vmul.f32 %v941, %v698
        %v945 = vadd.f32 %v937, %v943
        %v946 = vadd.f32 %v938, %v944
        %v947 = vsel %vm770, %v945, 0.0
        %v948 = vrot.slane %v947, 4
        %v949 = vadd.f32 %v947, %v948
        %v950 = vrot.slane %v949, 2
        %v951 = vadd.f32 %v949, %v950
        %v952 = vrot.slane %v951, 1
        %v953 = vadd.f32 %v951, %v952
        %v954 = vsel %vm770, %v946, 0.0
        %v955 = vrot.slane %v954, 4
        %v956 = vadd.f32 %v954, %v955
        %v957 = vrot.slane %v956, 2
        %v958 = vadd.f32 %v956, %v957
        %v959 = vrot.slane %v958, 1
        %v960 = vadd.f32 %v958, %v959
        %s961 = sld [smem:[#allocation6 + $0x2]]
        %v962 = vstv %s961
        %v963 = vadd.f32 %v953, %v962
        %v964 = vadd.f32 %v960, %v962
        %v965 = vsel %vm632, %v787, %v875
        %v966 = vsel %vm632, %v788, %v876
        %v967 = vsel %vm770, %v965, %v963
        %v968 = vsel %vm770, %v966, %v964
        %v971 = vcombine.low %v967, %v968
        %973 = vst [vmem:[%s293] sm:$0x77] %v971
        %p974 = scmp.lt.s32.totalorder %s20, 1
        %s975 = scalar_select %p974, %s20, 1
        %s976 = smul.addr %s975, 2
        %s977 = smul.addr %s976, 4
        %s978 = scalar_lea.vmem %s6, %s977
        // Predicated region
        $region57: #{tpu_custom_call.1} parent=43 // pred_check
          %p979 = pneg %p169
        $region58: #{tpu_custom_call.1} parent=43 // pred_check_branch
          %981 = sbr.rel (%p979) target = $region60
        $region59: #{tpu_custom_call.1} parent=43 // pred_region
          _
        $region60: #{tpu_custom_call.1} parent=43 // pred_fallthru
          _
      $region44: #{tpu_custom_call.1} parent=5 // pred_fallthru
        _
      %p982 = scmp.le.s32.totalorder 2, %s15
      // Predicated region
      $region61: #{tpu_custom_call.1} parent=5 // pred_check
        %p983 = pneg %p982
      $region62: #{tpu_custom_call.1} parent=5 // pred_check_branch
        %985 = sbr.rel (%p983) target = $region64
      $region63: #{tpu_custom_call.1} parent=5 // pred_region
        %s986 = ssub.s32 %s15, 2
        // Predicated region
        $region65: #{tpu_custom_call.1} parent=63 // pred_check
          %p987 = pneg %p175
        $region66: #{tpu_custom_call.1} parent=63 // pred_check_branch
          %989 = sbr.rel (%p987) target = $region68
        $region67: #{tpu_custom_call.1} parent=63 // pred_region
          %p990 = scmp.lt.s32.totalorder %s21, 1
          %s991 = scalar_select %p990, %s21, 1
          %s992 = smul.addr %s991, 2
          %s993 = smul.addr %s992, 4
          %s994 = scalar_lea.vmem %s6, %s993
        $region68: #{tpu_custom_call.1} parent=63 // pred_fallthru
          _
      $region64: #{tpu_custom_call.1} parent=5 // pred_fallthru
        _
    $region6: #{tpu_custom_call.1} parent=1 // loop_footer
      %s19 = sadd.s32 1, %s15
    $region7: #{tpu_custom_call.1} parent=1 // loop_footer_branch
      %14 = sbr.rel target = $region3
    $region8: #{tpu_custom_call.1} parent=1 // loop_exit
      _
    %995 = vsyncpa [#allocation3], 1
    %s996 = scalar_lea.sflag [#allocation3], 1
    %997 = vsyncpa %s996, 1
    %998 = vsyncpa [#allocation4], 1
    %s999 = scalar_lea.sflag [#allocation4], 1
    %1000 = vsyncpa %s999, 1
    %1001 = vsyncpa [#allocation7], 1

</llo_original>
